<compile_context>
chip_gen: v7x
topology: tpu7x:2x2x1
jax: 0.10.0
libtpu: 0.0.40
codegen_flags: <defaults>
</compile_context>

<pallas_src>
import numpy as np
import jax
import jax.numpy as jnp
from jax.experimental import pallas as pl
from jax.experimental.pallas import tpu as pltpu


def _round_up(x, m):
    return (x + m - 1) // m * m


# ---------------------------------------------------------------------------
# Pallas kernel: one heterogeneous RGCN layer.
# Grid: (i = Ndst row tile [parallel], r = relation [arbitrary, reduction]).
# Per (i, r):   o[i] += ((A_r[i] @ X) * dinv_r[i]) @ W_r    (+ sum_r b_r at last r)
# ---------------------------------------------------------------------------
def rgcn_layer_kernel(a_ref, dinv_ref, x_ref, w_ref, bsum_ref, o_ref):
    r = pl.program_id(1)

    @pl.when(r == 0)
    def _():
        o_ref[...] = jnp.zeros_like(o_ref)

    # message passing: aggregate neighbor features on the MXU.
    # A is stored bf16 (exact for a 0/1 adjacency); upcast keeps full f32 math.
    msg = jnp.dot(a_ref[0].astype(jnp.float32), x_ref[...],
                  preferred_element_type=jnp.float32)
    # norm='right': divide by clamped in-degree of each destination row
    msg = msg * dinv_ref[0]
    # per-relation projection, accumulated directly into the resident out tile
    o_ref[...] += jnp.dot(msg, w_ref[0], preferred_element_type=jnp.float32)

    @pl.when(r == pl.num_programs(1) - 1)
    def _():
        o_ref[...] += bsum_ref[...]        # bias pre-summed over relations


def rgcn_layer(A, X, W, b, *, row_tile=128):
    """A: (R, Ndst, Nsrc) f32 0/1, X: (Nsrc, Fin) f32,
    W: (R, Fin, Fout) f32, b: (R, Fout) f32  ->  (Ndst, Fout) f32."""
    R, Ndst, Nsrc = A.shape
    Fin, Fout = W.shape[1], W.shape[2]

    # right-norm (DGL GraphConv norm='right'): 1 / clamp(in_degree, 1)
    deg = jnp.sum(A, axis=-1, keepdims=True)                 # (R, Ndst, 1)
    dinv = 1.0 / jnp.maximum(deg, 1.0)

    # --- padding for TPU layout -------------------------------------------
    # rows: multiple of 16 (bf16 sublane packing) and tileable by `tm`
    tm = min(row_tile, _round_up(Ndst, 16))
    ndst_p = _round_up(Ndst, tm)
    # features: pad to 128 lanes so MXU passes / output stores are lane-dense
    fin_p = _round_up(Fin, 128)
    fout_p = _round_up(Fout, 128)

    A_p = jnp.zeros((R, ndst_p, Nsrc), jnp.bfloat16)
    A_p = A_p.at[:, :Ndst, :].set(A.astype(jnp.bfloat16))
    dinv_p = jnp.ones((R, ndst_p, 1), jnp.float32).at[:, :Ndst, :].set(dinv)
    X_p = jnp.zeros((Nsrc, fin_p), jnp.float32).at[:, :Fin].set(
        X.astype(jnp.float32))
    W_p = jnp.zeros((R, fin_p, fout_p), jnp.float32).at[:, :Fin, :Fout].set(W)
    bsum_p = jnp.zeros((1, fout_p), jnp.float32).at[0, :Fout].set(
        jnp.sum(b, axis=0))

    grid = (ndst_p // tm, R)

    out = pl.pallas_call(
        rgcn_layer_kernel,
        out_shape=jax.ShapeDtypeStruct((ndst_p, fout_p), jnp.float32),
        grid_spec=pltpu.PrefetchScalarGridSpec(
            num_scalar_prefetch=0,
            grid=grid,
            in_specs=[
                # per-relation adjacency row tile (bf16)
                pl.BlockSpec((1, tm, Nsrc), lambda i, r: (r, i, 0)),
                # per-relation right-norm slice for this row tile
                pl.BlockSpec((1, tm, 1), lambda i, r: (r, i, 0)),
                # source features: resident across the whole grid
                pl.BlockSpec((Nsrc, fin_p), lambda i, r: (0, 0)),
                # per-relation projection weights
                pl.BlockSpec((1, fin_p, fout_p), lambda i, r: (r, 0, 0)),
                # relation-summed bias: resident
                pl.BlockSpec((1, fout_p), lambda i, r: (0, 0)),
            ],
            out_specs=pl.BlockSpec((tm, fout_p), lambda i, r: (i, 0)),
        ),
        compiler_params=pltpu.CompilerParams(
            dimension_semantics=("parallel", "arbitrary"),
        ),
    )(A_p, dinv_p, X_p, W_p, bsum_p)

    return out[:Ndst, :Fout]


class StochasticTwoLayerRGCNPallas:
    """Mirrors StochasticTwoLayerRGCN.forward(blocks, x) with dense per-relation
    adjacency MFG 'blocks' and a single node type."""

    def __init__(self, in_feat, hidden_feat, out_feat, num_rels, key):
        k = jax.random.split(key, 4)
        # deterministic synthetic init (shapes match dglnn.GraphConv params)
        self.W1 = (jax.random.normal(k[0], (num_rels, in_feat, hidden_feat),
                                     jnp.float32) * 0.1)
        self.b1 = (jax.random.normal(k[1], (num_rels, hidden_feat),
                                     jnp.float32) * 0.01)
        self.W2 = (jax.random.normal(k[2], (num_rels, hidden_feat, out_feat),
                                     jnp.float32) * 0.1)
        self.b2 = (jax.random.normal(k[3], (num_rels, out_feat),
                                     jnp.float32) * 0.01)

    def __call__(self, blocks, x):
        A0, A1 = blocks                       # (R, N1, N0), (R, N2, N1)
        h = rgcn_layer(A0, x, self.W1, self.b1)
        h = rgcn_layer(A1, h, self.W2, self.b2)
        return h


# pure-JAX reference for correctness check
def rgcn_layer_ref(A, X, W, b):
    deg = jnp.sum(A, axis=-1, keepdims=True)
    dinv = 1.0 / jnp.maximum(deg, 1.0)
    msg = jnp.einsum("rds,sf->rdf", A, X) * dinv
    return jnp.einsum("rdf,rfo->do", msg, W) + jnp.sum(b, axis=0)


if __name__ == "__main__":
    key = jax.random.PRNGKey(0)
    k_a0, k_a1, k_x, k_p = jax.random.split(key, 4)

    # small synthetic shapes
    R = 3                       # number of relations (rel_names)
    N0, N1, N2 = 32, 24, 16     # src of block0, dst0/src1, dst of block1
    in_feat, hidden_feat, out_feat = 16, 32, 8

    # dense per-relation MFG adjacencies (dst x src), binary
    A0 = jax.random.bernoulli(k_a0, 0.3, (R, N1, N0)).astype(jnp.float32)
    A1 = jax.random.bernoulli(k_a1, 0.3, (R, N2, N1)).astype(jnp.float32)
    x = jax.random.normal(k_x, (N0, in_feat), jnp.float32)

    model = StochasticTwoLayerRGCNPallas(in_feat, hidden_feat, out_feat, R, k_p)

    out = jax.block_until_ready(model((A0, A1), x))
    assert out.shape == (N2, out_feat)

    # reference check (exact f32 path in the kernel -> tight tolerance)
    h_ref = rgcn_layer_ref(A0, x, model.W1, model.b1)
    out_ref = rgcn_layer_ref(A1, h_ref, model.W2, model.b2)
    np.testing.assert_allclose(np.asarray(out), np.asarray(out_ref),
                               rtol=1e-4, atol=1e-4)

    print("KERNEL_OK")
</pallas_src>

<mosaic_0001>
module attributes {stable_mosaic.version = 11 : i64} {
  func.func @rgcn_layer_kernel(%arg0: i32, %arg1: i32, %arg2: memref<1x32x32xbf16, #tpu.memory_space<vmem>>, %arg3: memref<1x32x1xf32, #tpu.memory_space<vmem>>, %arg4: memref<32x128xf32, #tpu.memory_space<vmem>>, %arg5: memref<1x128x128xf32, #tpu.memory_space<vmem>>, %arg6: memref<1x128xf32, #tpu.memory_space<vmem>>, %arg7: memref<32x128xf32, #tpu.memory_space<vmem>>) attributes {dimension_semantics = [#tpu.dimension_semantics<parallel>, #tpu.dimension_semantics<arbitrary>], iteration_bounds = array<i64: 1, 3>, scalar_prefetch = 0 : i64, scratch_operands = 0 : i64, tpu.core_type = #tpu.core_type<tc>, window_params = [{transform_indices = @transform_0, window_bounds = array<i64: 1, 32, 32>}, {transform_indices = @transform_1, window_bounds = array<i64: 1, 32, 1>}, {pipeline_mode = #tpu.pipeline_mode<synchronous>, transform_indices = @transform_2, window_bounds = array<i64: 32, 128>}, {transform_indices = @transform_3, window_bounds = array<i64: 1, 128, 128>}, {pipeline_mode = #tpu.pipeline_mode<synchronous>, transform_indices = @transform_4, window_bounds = array<i64: 1, 128>}, {transform_indices = @transform_5, window_bounds = array<i64: 32, 128>}]} {
    %c0_i32 = arith.constant 0 : i32
    %0 = arith.cmpi eq, %arg1, %c0_i32 : i32
    %1 = arith.extui %0 : i1 to i32
    %c0_i32_0 = arith.constant 0 : i32
    %2 = arith.cmpi ne, %1, %c0_i32_0 : i32
    scf.if %2 {
      %cst_17 = arith.constant 0.000000e+00 : f32
      %21 = vector.broadcast %cst_17 : f32 to vector<32x128xf32>
      %c0_18 = arith.constant 0 : index
      %c0_19 = arith.constant 0 : index
      %22 = vector.load %arg7[%c0_18, %c0_19] : memref<32x128xf32, #tpu.memory_space<vmem>>, vector<32x128xf32>
      tpu.vector_store %arg7[%c0_18, %c0_19], %21 {strides = array<i32>} : memref<32x128xf32, #tpu.memory_space<vmem>>, vector<32x128xf32>,
    } else {
    }
    %c0 = arith.constant 0 : index
    %c0_1 = arith.constant 0 : index
    %c0_2 = arith.constant 0 : index
    %3 = vector.load %arg2[%c0, %c0_1, %c0_2] : memref<1x32x32xbf16, #tpu.memory_space<vmem>>, vector<1x32x32xbf16>
    %4 = vector.shape_cast %3 : vector<1x32x32xbf16> to vector<32x32xbf16>
    %5 = arith.extf %4 : vector<32x32xbf16> to vector<32x32xf32>
    %c0_3 = arith.constant 0 : index
    %c0_4 = arith.constant 0 : index
    %6 = vector.load %arg4[%c0_3, %c0_4] : memref<32x128xf32, #tpu.memory_space<vmem>>, vector<32x128xf32>
    %cst = arith.constant dense<0.000000e+00> : vector<32x128xf32>
    %7 = tpu.matmul %5, %6, %cst {dimension_numbers = #tpu.dot_dimension_numbers<[1], [0], [0], [1], [0, 0, 1, 1], [], []>} : vector<32x32xf32>, vector<32x128xf32>, vector<32x128xf32> -> vector<32x128xf32>
    %c0_5 = arith.constant 0 : index
    %c0_6 = arith.constant 0 : index
    %c0_7 = arith.constant 0 : index
    %8 = vector.load %arg3[%c0_5, %c0_6, %c0_7] : memref<1x32x1xf32, #tpu.memory_space<vmem>>, vector<1x32x1xf32>
    %9 = vector.shape_cast %8 : vector<1x32x1xf32> to vector<32x1xf32>
    %10 = vector.broadcast %9 : vector<32x1xf32> to vector<32x128xf32>
    %11 = arith.mulf %7, %10 : vector<32x128xf32>
    %c0_8 = arith.constant 0 : index
    %c0_9 = arith.constant 0 : index
    %12 = vector.load %arg7[%c0_8, %c0_9] : memref<32x128xf32, #tpu.memory_space<vmem>>, vector<32x128xf32>
    %c0_10 = arith.constant 0 : index
    %c0_11 = arith.constant 0 : index
    %c0_12 = arith.constant 0 : index
    %13 = vector.load %arg5[%c0_10, %c0_11, %c0_12] : memref<1x128x128xf32, #tpu.memory_space<vmem>>, vector<1x128x128xf32>
    %14 = vector.shape_cast %13 : vector<1x128x128xf32> to vector<128x128xf32>
    %cst_13 = arith.constant dense<0.000000e+00> : vector<32x128xf32>
    %15 = tpu.matmul %11, %14, %cst_13 {dimension_numbers = #tpu.dot_dimension_numbers<[1], [0], [0], [1], [0, 0, 1, 1], [], []>} : vector<32x128xf32>, vector<128x128xf32>, vector<32x128xf32> -> vector<32x128xf32>
    %16 = arith.addf %12, %15 : vector<32x128xf32>
    %c0_14 = arith.constant 0 : index
    %c0_15 = arith.constant 0 : index
    %17 = vector.load %arg7[%c0_14, %c0_15] : memref<32x128xf32, #tpu.memory_space<vmem>>, vector<32x128xf32>
    tpu.vector_store %arg7[%c0_14, %c0_15], %16 {strides = array<i32>} : memref<32x128xf32, #tpu.memory_space<vmem>>, vector<32x128xf32>,
    %c2_i32 = arith.constant 2 : i32
    %18 = arith.cmpi eq, %arg1, %c2_i32 : i32
    %19 = arith.extui %18 : i1 to i32
    %c0_i32_16 = arith.constant 0 : i32
    %20 = arith.cmpi ne, %19, %c0_i32_16 : i32
    scf.if %20 {
      %c0_17 = arith.constant 0 : index
      %c0_18 = arith.constant 0 : index
      %21 = vector.load %arg7[%c0_17, %c0_18] : memref<32x128xf32, #tpu.memory_space<vmem>>, vector<32x128xf32>
      %c0_19 = arith.constant 0 : index
      %c0_20 = arith.constant 0 : index
      %22 = vector.load %arg6[%c0_19, %c0_20] : memref<1x128xf32, #tpu.memory_space<vmem>>, vector<1x128xf32>
      %23 = vector.broadcast %22 : vector<1x128xf32> to vector<32x128xf32>
      %24 = arith.addf %21, %23 : vector<32x128xf32>
      %c0_21 = arith.constant 0 : index
      %c0_22 = arith.constant 0 : index
      %25 = vector.load %arg7[%c0_21, %c0_22] : memref<32x128xf32, #tpu.memory_space<vmem>>, vector<32x128xf32>
      tpu.vector_store %arg7[%c0_21, %c0_22], %24 {strides = array<i32>} : memref<32x128xf32, #tpu.memory_space<vmem>>, vector<32x128xf32>,
    } else {
    }
    return
  }
  func.func @transform_0(%arg0: i32, %arg1: i32) -> (i32, i32, i32) {
    %c0_i32 = arith.constant 0 : i32
    %c0_i32_0 = arith.constant 0 : i32
    return %arg1, %arg0, %c0_i32 : i32, i32, i32
  }
  func.func @transform_1(%arg0: i32, %arg1: i32) -> (i32, i32, i32) {
    %c0_i32 = arith.constant 0 : i32
    %c0_i32_0 = arith.constant 0 : i32
    return %arg1, %arg0, %c0_i32 : i32, i32, i32
  }
  func.func @transform_2(%arg0: i32, %arg1: i32) -> (i32, i32) {
    %c0_i32 = arith.constant 0 : i32
    %c0_i32_0 = arith.constant 0 : i32
    %c0_i32_1 = arith.constant 0 : i32
    return %c0_i32, %c0_i32_0 : i32, i32
  }
  func.func @transform_3(%arg0: i32, %arg1: i32) -> (i32, i32, i32) {
    %c0_i32 = arith.constant 0 : i32
    %c0_i32_0 = arith.constant 0 : i32
    %c0_i32_1 = arith.constant 0 : i32
    return %arg1, %c0_i32, %c0_i32_0 : i32, i32, i32
  }
  func.func @transform_4(%arg0: i32, %arg1: i32) -> (i32, i32) {
    %c0_i32 = arith.constant 0 : i32
    %c0_i32_0 = arith.constant 0 : i32
    %c0_i32_1 = arith.constant 0 : i32
    return %c0_i32, %c0_i32_0 : i32, i32
  }
  func.func @transform_5(%arg0: i32, %arg1: i32) -> (i32, i32) {
    %c0_i32 = arith.constant 0 : i32
    %c0_i32_0 = arith.constant 0 : i32
    return %arg0, %c0_i32 : i32, i32
  }
}

</mosaic_0001>

<llo_original>
// kernel: tpu_custom_call.1
$region0: #{tpu_custom_call.1}
  #allocation0 [shape = 'u32[]', space=smem, size = 0x4, offset = 0x4, fixed_abs, tag = 'smem constant byte address 0x4 - core index']
  #allocation1 [shape = 'u32[144,128]{1,0:T(1,128)}', space=vmem, size = 0x12000, scoped, tag = 'internal scratch']
  %s0 = inlined_call_operand.vmem [shape: bf16[3,32,32], index: 0, kind: input, shape index: {}]
  %s1 = inlined_call_operand.vmem [shape: f32[3,32,1], index: 1, kind: input, shape index: {}]
  %s2 = inlined_call_operand.vmem [shape: f32[32,128], index: 2, kind: input, shape index: {}]
  %s3 = inlined_call_operand.hbm [shape: f32[3,128,128], index: 3, kind: input, shape index: {}]
  %s4 = inlined_call_operand.vmem [shape: f32[1,128], index: 4, kind: input, shape index: {}]
  %s5 = inlined_call_operand.hbm [shape: f32[32,128], index: 5, kind: output, shape index: {}]
  %s6 = sld [smem:[#allocation0]]
  $region65: #{tpu_custom_call.1} parent=0
    _
  %s8 = ssub.s32 1, %s6
  %s9 = scalar_select 0, %s8, %s6
  $region1: #{tpu_custom_call.1} parent=0
    #allocation2 [shape = 'u8[131072]{0}', space=vmem, size = 0x20000, scoped, tag = 'input window, operand 3']
    #allocation3 [shape = 's32[2]{0}', space=sflag, size = 0x8, scoped, tag = 'scoped memory for tpu_custom_call.1']
    #allocation4 [shape = 's32[2]{0}', space=sflag, size = 0x8, scoped, tag = 'scoped memory for tpu_custom_call.1']
    #allocation5 [shape = 'u8[16384]{0}', space=vmem, size = 0x4000, scoped, tag = 'output window, operand 0, single buffered']
    %10 = vsyncpa [#allocation3], 0
    %s11 = scalar_lea.sflag [#allocation3], 1
    %12 = vsyncpa %s11, 0
    %13 = vsyncpa [#allocation4], 0
    loop: start=0, step=1, limit=5
    $region2: #{tpu_custom_call.1} parent=1 // loop_pre_header
      _
    $region3: #{tpu_custom_call.1} parent=1 // loop_header
      %s15 = sphi 0, %s19
      %p16 = scmp.ge.s32.totalorder %s15, 5
      %s22 = sphi 0, %s34
      %s23 = sphi 0, %s30
      %s24 = sphi 0, %s22
      %s25 = sphi 0, %s23
      %s26 = sphi 0, %s24
      %s27 = sphi 0, %s25
      %s39 = sphi 0, %s41
      %s42 = sphi 0, %s39
      %s43 = sphi 0, %s42
      %s59 = sphi 0, %s43
      %s67 = sphi 0, %s69
      %s70 = sphi 0, %s67
      %s71 = sphi 0, %s70
      %s87 = sphi 0, %s71
      %s91 = sphi 0, %s91
      %s93 = sphi 0, %s91
      %s94 = sphi 0, %s93
      %s108 = sphi 0, %s94
      %s114 = sphi 0, %s116
      %s117 = sphi 0, %s114
      %s118 = sphi 0, %s117
      %s134 = sphi 0, %s118
      %s138 = sphi 0, %s138
      %s140 = sphi 0, %s138
      %s141 = sphi 0, %s140
      %s155 = sphi 0, %s141
      %s161 = sphi 0, %s163
      %s164 = sphi 0, %s161
      %s165 = sphi 0, %s164
      %s181 = sphi 0, %s165
    $region4: #{tpu_custom_call.1} parent=1 // loop_header_branch
      %18 = sbr.rel (%p16) target = $region8
    $region5: #{tpu_custom_call.1} parent=1 // loop_body
      %s20 = ssub.s32 %s15, 1
      %s21 = ssub.s32 %s15, 2
      %s28 = sadd.s32 1, %s23
      %p29 = scmp.ge.s32.totalorder %s28, 3
      %s30 = scalar_select %p29, 0, %s28
      %s31 = sadd.s32 1, %s22
      %s32 = scalar_select %p29, %s31, %s22
      %p33 = scmp.ge.s32.totalorder %s32, 1
      %s34 = scalar_select %p33, 0, %s32
      %s35 = ssub.s32 %s23, %s30
      %s36 = ssub.s32 %s22, %s34
      %s37 = sor.u32 %s35, %s36
      %p38 = scmp.eq.s32.totalorder %s37, 0
      %s40 = sadd.s32 %s39, 1
      %s41 = scalar_select %p38, %s39, %s40
      %p44 = pneg %p38
      %p45 = scmp.eq.s32.totalorder %s15, 2
      %p46 = por %p44, %p45
      %p47 = scmp.ne.s32.totalorder %s39, %s42
      %p48 = scmp.eq.s32.totalorder %s15, 0
      %p49 = por %p47, %p48
      %p50 = scmp.ne.s32.totalorder %s39, %s42
      %p51 = scmp.eq.s32.totalorder %s20, 2
      %p52 = por %p50, %p51
      %p53 = scmp.ne.s32.totalorder %s42, %s43
      %p54 = scmp.eq.s32.totalorder %s20, 0
      %p55 = por %p53, %p54
      %p56 = scmp.ne.s32.totalorder %s42, %s43
      %p57 = scmp.eq.s32.totalorder %s21, 2
      %p58 = por %p56, %p57
      %p60 = scmp.ne.s32.totalorder %s43, %s59
      %p61 = scmp.eq.s32.totalorder %s21, 0
      %p62 = por %p60, %p61
      %s63 = ssub.s32 %s23, %s30
      %s64 = ssub.s32 %s22, %s34
      %s65 = sor.u32 %s63, %s64
      %p66 = scmp.eq.s32.totalorder %s65, 0
      %s68 = sadd.s32 %s67, 1
      %s69 = scalar_select %p66, %s67, %s68
      %p72 = pneg %p66
      %p73 = scmp.eq.s32.totalorder %s15, 2
      %p74 = por %p72, %p73
      %p75 = scmp.ne.s32.totalorder %s67, %s70
      %p76 = scmp.eq.s32.totalorder %s15, 0
      %p77 = por %p75, %p76
      %p78 = scmp.ne.s32.totalorder %s67, %s70
      %p79 = scmp.eq.s32.totalorder %s20, 2
      %p80 = por %p78, %p79
      %p81 = scmp.ne.s32.totalorder %s70, %s71
      %p82 = scmp.eq.s32.totalorder %s20, 0
      %p83 = por %p81, %p82
      %p84 = scmp.ne.s32.totalorder %s70, %s71
      %p85 = scmp.eq.s32.totalorder %s21, 2
      %p86 = por %p84, %p85
      %p88 = scmp.ne.s32.totalorder %s71, %s87
      %p89 = scmp.eq.s32.totalorder %s21, 0
      %p90 = por %p88, %p89
      %s92 = sadd.s32 %s91, 1
      %p95 = scmp.eq.s32.totalorder %s15, 2
      %p96 = scmp.ne.s32.totalorder %s91, %s93
      %p97 = scmp.eq.s32.totalorder %s15, 0
      %p98 = por %p96, %p97
      %p99 = scmp.ne.s32.totalorder %s91, %s93
      %p100 = scmp.eq.s32.totalorder %s20, 2
      %p101 = por %p99, %p100
      %p102 = scmp.ne.s32.totalorder %s93, %s94
      %p103 = scmp.eq.s32.totalorder %s20, 0
      %p104 = por %p102, %p103
      %p105 = scmp.ne.s32.totalorder %s93, %s94
      %p106 = scmp.eq.s32.totalorder %s21, 2
      %p107 = por %p105, %p106
      %p109 = scmp.ne.s32.totalorder %s94, %s108
      %p110 = scmp.eq.s32.totalorder %s21, 0
      %p111 = por %p109, %p110
      %s112 = ssub.s32 %s23, %s30
      %p113 = scmp.eq.s32.totalorder %s112, 0
      %s115 = sadd.s32 %s114, 1
      %s116 = scalar_select %p113, %s114, %s115
      %p119 = pneg %p113
      %p120 = scmp.eq.s32.totalorder %s15, 2
      %p121 = por %p119, %p120
      %p122 = scmp.ne.s32.totalorder %s114, %s117
      %p123 = scmp.eq.s32.totalorder %s15, 0
      %p124 = por %p122, %p123
      %p125 = scmp.ne.s32.totalorder %s114, %s117
      %p126 = scmp.eq.s32.totalorder %s20, 2
      %p127 = por %p125, %p126
      %p128 = scmp.ne.s32.totalorder %s117, %s118
      %p129 = scmp.eq.s32.totalorder %s20, 0
      %p130 = por %p128, %p129
      %p131 = scmp.ne.s32.totalorder %s117, %s118
      %p132 = scmp.eq.s32.totalorder %s21, 2
      %p133 = por %p131, %p132
      %p135 = scmp.ne.s32.totalorder %s118, %s134
      %p136 = scmp.eq.s32.totalorder %s21, 0
      %p137 = por %p135, %p136
      %s139 = sadd.s32 %s138, 1
      %p142 = scmp.eq.s32.totalorder %s15, 2
      %p143 = scmp.ne.s32.totalorder %s138, %s140
      %p144 = scmp.eq.s32.totalorder %s15, 0
      %p145 = por %p143, %p144
      %p146 = scmp.ne.s32.totalorder %s138, %s140
      %p147 = scmp.eq.s32.totalorder %s20, 2
      %p148 = por %p146, %p147
      %p149 = scmp.ne.s32.totalorder %s140, %s141
      %p150 = scmp.eq.s32.totalorder %s20, 0
      %p151 = por %p149, %p150
      %p152 = scmp.ne.s32.totalorder %s140, %s141
      %p153 = scmp.eq.s32.totalorder %s21, 2
      %p154 = por %p152, %p153
      %p156 = scmp.ne.s32.totalorder %s141, %s155
      %p157 = scmp.eq.s32.totalorder %s21, 0
      %p158 = por %p156, %p157
      %s159 = ssub.s32 %s22, %s34
      %p160 = scmp.eq.s32.totalorder %s159, 0
      %s162 = sadd.s32 %s161, 1
      %s163 = scalar_select %p160, %s161, %s162
      %p166 = pneg %p160
      %p167 = scmp.eq.s32.totalorder %s15, 2
      %p168 = por %p166, %p167
      %p169 = scmp.ne.s32.totalorder %s161, %s164
      %p170 = scmp.eq.s32.totalorder %s15, 0
      %p171 = por %p169, %p170
      %p172 = scmp.ne.s32.totalorder %s161, %s164
      %p173 = scmp.eq.s32.totalorder %s20, 2
      %p174 = por %p172, %p173
      %p175 = scmp.ne.s32.totalorder %s164, %s165
      %p176 = scmp.eq.s32.totalorder %s20, 0
      %p177 = por %p175, %p176
      %p178 = scmp.ne.s32.totalorder %s164, %s165
      %p179 = scmp.eq.s32.totalorder %s21, 2
      %p180 = por %p178, %p179
      %p182 = scmp.ne.s32.totalorder %s165, %s181
      %p183 = scmp.eq.s32.totalorder %s21, 0
      %p184 = por %p182, %p183
      %p185 = scmp.le.s32.totalorder 1, %s15
      %p186 = scmp.lt.s32.totalorder %s15, 4
      %p187 = pnand %p185, %p186
      %p188 = pneg %p187
      // Predicated region
      $region9: #{tpu_custom_call.1} parent=5 // pred_check
        _
      $region10: #{tpu_custom_call.1} parent=5 // pred_check_branch
        %190 = sbr.rel (%p187) target = $region12
      $region11: #{tpu_custom_call.1} parent=5 // pred_region
        %s191 = ssub.s32 %s15, 1
        // Predicated region
        $region13: #{tpu_custom_call.1} parent=11 // pred_check
          %p192 = pneg %p104
        $region14: #{tpu_custom_call.1} parent=11 // pred_check_branch
          %194 = sbr.rel (%p192) target = $region16
        $region15: #{tpu_custom_call.1} parent=11 // pred_region
          _
        $region16: #{tpu_custom_call.1} parent=11 // pred_fallthru
          _
        // Predicated region
        $region17: #{tpu_custom_call.1} parent=11 // pred_check
          %p195 = pneg %p151
        $region18: #{tpu_custom_call.1} parent=11 // pred_check_branch
          %197 = sbr.rel (%p195) target = $region20
        $region19: #{tpu_custom_call.1} parent=11 // pred_region
          _
        $region20: #{tpu_custom_call.1} parent=11 // pred_fallthru
          _
      $region12: #{tpu_custom_call.1} parent=5 // pred_fallthru
        _
      %p198 = scmp.lt.s32.totalorder %s15, 3
      // Predicated region
      $region21: #{tpu_custom_call.1} parent=5 // pred_check
        %p199 = pneg %p198
      $region22: #{tpu_custom_call.1} parent=5 // pred_check_branch
        %201 = sbr.rel (%p199) target = $region24
      $region23: #{tpu_custom_call.1} parent=5 // pred_region
        // Predicated region
        $region25: #{tpu_custom_call.1} parent=23 // pred_check
          %p202 = pneg %p49
        $region26: #{tpu_custom_call.1} parent=23 // pred_check_branch
          %204 = sbr.rel (%p202) target = $region28
        $region27: #{tpu_custom_call.1} parent=23 // pred_region
          %s205 = smul.u32 4, %s22
          %p206 = scmp.lt.s32.totalorder %s23, 2
          %s207 = scalar_select %p206, %s23, 2
          %p208 = scmp.lt.s32.totalorder %s205, 3
          %s209 = scalar_select %p208, %s205, 3
          %s210 = smul.addr %s207, 4
          %s211 = sadd.s32 %s209, %s210
          %s212 = smul.addr %s211, 4
          %s213 = scalar_lea.vmem %s0, %s212
          %s214 = smul.u32 4, %s22
        $region28: #{tpu_custom_call.1} parent=23 // pred_fallthru
          _
        // Predicated region
        $region29: #{tpu_custom_call.1} parent=23 // pred_check
          %p215 = pneg %p77
        $region30: #{tpu_custom_call.1} parent=23 // pred_check_branch
          %217 = sbr.rel (%p215) target = $region32
        $region31: #{tpu_custom_call.1} parent=23 // pred_region
          %s218 = smul.u32 4, %s22
          %p219 = scmp.lt.s32.totalorder %s23, 2
          %s220 = scalar_select %p219, %s23, 2
          %p221 = scmp.lt.s32.totalorder %s218, 3
          %s222 = scalar_select %p221, %s218, 3
          %s223 = smul.addr %s220, 4
          %s224 = sadd.s32 %s222, %s223
          %s225 = smul.addr %s224, 8
          %s226 = scalar_lea.vmem %s1, %s225
          %s227 = smul.u32 4, %s22
        $region32: #{tpu_custom_call.1} parent=23 // pred_fallthru
          _
        // Predicated region
        $region33: #{tpu_custom_call.1} parent=23 // pred_check
          %p228 = pneg %p124
        $region34: #{tpu_custom_call.1} parent=23 // pred_check_branch
          %230 = sbr.rel (%p228) target = $region36
        $region35: #{tpu_custom_call.1} parent=23 // pred_region
          %s231 = sand.u32 %s114, 1
          %s232 = scalar_lea.sflag [#allocation3], %s231
          %s233 = sand.u32 %s114, 1
          %s234 = smul.addr %s233, 128
          %s235 = scalar_lea.vmem [#allocation2], %s234
          %s237 = ssub.s32 2048, 2048
          %238 = vsyncadd %s232, %s237
          %s239 = smul.addr %s23, 16
          %s240 = smul.addr %s239, 128
          %s241 = scalar_lea.hbm %s3, %s240
          %s242 = sshll.u32 %s235, 4
          %s243 = int_to_ptr.vmem [resolvable:$true] %s242
          %248 = dma.hbm_to_vmem [thread:$0]  %s241, 2048, %s243, %s232, 128, 128, 8
        $region36: #{tpu_custom_call.1} parent=23 // pred_fallthru
          _
      $region24: #{tpu_custom_call.1} parent=5 // pred_fallthru
        _
      %p249 = scmp.le.s32.totalorder 1, %s15
      %p250 = scmp.lt.s32.totalorder %s15, 4
      %p251 = pnand %p249, %p250
      %p252 = pneg %p251
      // Predicated region
      $region37: #{tpu_custom_call.1} parent=5 // pred_check
        _
      $region38: #{tpu_custom_call.1} parent=5 // pred_check_branch
        %254 = sbr.rel (%p251) target = $region40
      $region39: #{tpu_custom_call.1} parent=5 // pred_region
        %s255 = ssub.s32 %s15, 1
        %s256 = sand.u32 %s117, 1
        %s257 = scalar_lea.sflag [#allocation3], %s256
        %s258 = sand.u32 %s117, 1
        %s259 = smul.addr %s258, 128
        %s260 = scalar_lea.vmem [#allocation2], %s259
        // Predicated region
        $region41: #{tpu_custom_call.1} parent=39 // pred_check
          %p261 = pneg %p130
        $region42: #{tpu_custom_call.1} parent=39 // pred_check_branch
          %263 = sbr.rel (%p261) target = $region44
        $region43: #{tpu_custom_call.1} parent=39 // pred_region
          %264 = dma.done %s257, 2048
        $region44: #{tpu_custom_call.1} parent=39 // pred_fallthru
          _
        %s265 = smul.u32 4, %s24
        %p266 = scmp.lt.s32.totalorder %s25, 2
        %s267 = scalar_select %p266, %s25, 2
        %p268 = scmp.lt.s32.totalorder %s265, 3
        %s269 = scalar_select %p268, %s265, 3
        %s270 = smul.addr %s267, 4
        %s271 = sadd.s32 %s269, %s270
        %s272 = smul.addr %s271, 4
        %s273 = scalar_lea.vmem %s0, %s272
        %p274 = pneg %p55
        %p275 = pneg %p52
        %s276 = smul.u32 4, %s24
        %p277 = scmp.lt.s32.totalorder %s25, 2
        %s278 = scalar_select %p277, %s25, 2
        %p279 = scmp.lt.s32.totalorder %s276, 3
        %s280 = scalar_select %p279, %s276, 3
        %s281 = smul.addr %s278, 4
        %s282 = sadd.s32 %s280, %s281
        %s283 = smul.addr %s282, 8
        %s284 = scalar_lea.vmem %s1, %s283
        %p285 = pneg %p83
        %p286 = pneg %p80
        %p287 = pneg %p104
        %p288 = pneg %p101
        %s289 = sand.u32 %s117, 1
        %s290 = scalar_lea.sflag [#allocation3], %s289
        %s291 = sand.u32 %s117, 1
        %s292 = smul.addr %s291, 128
        %s293 = scalar_lea.vmem [#allocation2], %s292
        %p294 = pneg %p130
        %p295 = pneg %p127
        %p296 = pneg %p151
        %p297 = pneg %p148
        %p298 = pneg %p177
        %p299 = pneg %p174
        %s300 = smul.u32 4, %s24
        %p301 = scmp.lt.s32.totalorder %s25, 2
        %s302 = scalar_select %p301, %s25, 2
        %p303 = scmp.lt.s32.totalorder %s300, 3
        %s304 = scalar_select %p303, %s300, 3
        %s305 = smul.addr %s302, 4
        %s306 = sadd.s32 %s304, %s305
        %s307 = smul.addr %s306, 4
        %s308 = scalar_lea.vmem %s0, %s307
        %s309 = smul.u32 4, %s24
        %s310 = smul.u32 4, %s24
        %p311 = scmp.lt.s32.totalorder %s25, 2
        %s312 = scalar_select %p311, %s25, 2
        %p313 = scmp.lt.s32.totalorder %s310, 3
        %s314 = scalar_select %p313, %s310, 3
        %s315 = smul.addr %s312, 4
        %s316 = sadd.s32 %s314, %s315
        %s317 = smul.addr %s316, 8
        %s318 = scalar_lea.vmem %s1, %s317
        %s319 = smul.u32 4, %s24
        %s320 = smul.u32 4, %s24
        %p321 = scmp.eq.s32.totalorder %s25, 0
        // Predicated region
        $region45: #{tpu_custom_call.1} parent=39 // pred_check
          %p322 = pneg %p321
        $region46: #{tpu_custom_call.1} parent=39 // pred_check_branch
          %324 = sbr.rel (%p322) target = $region48
        $region47: #{tpu_custom_call.1} parent=39 // pred_region
          %325 = vst [vmem:[#allocation5] sm:$0xff] 0.0
          %326 = vst [vmem:[#allocation5 + $0x8] sm:$0xff] 0.0
          %327 = vst [vmem:[#allocation5 + $0x10] sm:$0xff] 0.0
          %328 = vst [vmem:[#allocation5 + $0x18] sm:$0xff] 0.0
        $region48: #{tpu_custom_call.1} parent=39 // pred_fallthru
          _
        %v329 = vld [vmem:[%s308] sm:$0xf]
        %v330 = vld [vmem:[%s308 + $0x4] sm:$0xf]
        %v331 = vld [vmem:[%s308 + $0x8] sm:$0xf]
        %v332 = vld [vmem:[%s308 + $0xc] sm:$0xf]
        %v333 = vunpack.c.l.bf16 %v329
        %v334 = vunpack.c.l.bf16 %v330
        %v335 = vunpack.c.l.bf16 %v331
        %v336 = vunpack.c.l.bf16 %v332
        %v337 = vld [vmem:[%s2] sm:$0xff]
        %v338 = vld [vmem:[%s2 + $0x8] sm:$0xff]
        %v339 = vld [vmem:[%s2 + $0x10] sm:$0xff]
        %v340 = vld [vmem:[%s2 + $0x18] sm:$0xff]
        %vm341 = vcmask 261120
        %v343 = vsel %vm341, %v333, 0
        %v346 = vsel %vm341, %v334, 0
        %v349 = vsel %vm341, %v335, 0
        %v352 = vsel %vm341, %v336, 0
        %354 = vmatprep.subr.mxu0 0.0
        %355 = vmatpush1.msra.mxu0 %v337
        %356 = vmatprep.subr.mxu0 0.0
        %357 = vmatpush1.msra.mxu0 %v338
        %358 = vmatprep.subr.mxu0 0.0
        %359 = vmatpush1.msra.mxu0 %v339
        %360 = vmatprep.subr.mxu0 0.0
        %361 = vmatpush1.msra.mxu0 %v340
        %362 = vmatprep.subr.mxu0 0.0
        %363 = vmatpush1.msra.mxu0 0.0
        %364 = vmatprep.subr.mxu0 0.0
        %365 = vmatpush1.msra.mxu0 0.0
        %366 = vmatprep.subr.mxu0 0.0
        %367 = vmatpush1.msra.mxu0 0.0
        %368 = vmatprep.subr.mxu0 0.0
        %369 = vmatpush1.msra.mxu0 0.0
        %370 = vmatprep.subr.mxu0 0.0
        %371 = vmatpush1.msra.mxu0 0.0
        %372 = vmatprep.subr.mxu0 0.0
        %373 = vmatpush1.msra.mxu0 0.0
        %374 = vmatprep.subr.mxu0 0.0
        %375 = vmatpush1.msra.mxu0 0.0
        %376 = vmatprep.subr.mxu0 0.0
        %377 = vmatpush1.msra.mxu0 0.0
        %378 = vmatprep.subr.mxu0 0.0
        %379 = vmatpush1.msra.mxu0 0.0
        %380 = vmatprep.subr.mxu0 0.0
        %381 = vmatpush1.msra.mxu0 0.0
        %382 = vmatprep.subr.mxu0 0.0
        %383 = vmatpush1.msra.mxu0 0.0
        %384 = vmatprep.subr.mxu0 0.0
        %385 = vmatpush1.msra.mxu0 0.0
        %386 = vmatprep.subr.mxu0 0.0
        %387 = vmatpush1.msra.mxu0 0.0
        %388 = vmatprep.subr.mxu0 0.0
        %389 = vmatpush1.msra.mxu0 0.0
        %390 = vmatprep.subr.mxu0 0.0
        %391 = vmatpush1.msra.mxu0 0.0
        %392 = vmatprep.subr.mxu0 0.0
        %393 = vmatpush1.msra.mxu0 0.0
        %394 = vmatprep.subr.mxu0 0.0
        %395 = vmatpush1.msra.mxu0 0.0
        %396 = vmatprep.subr.mxu0 0.0
        %397 = vmatpush1.msra.mxu0 0.0
        %398 = vmatprep.subr.mxu0 0.0
        %399 = vmatpush1.msra.mxu0 0.0
        %400 = vmatprep.subr.mxu0 0.0
        %401 = vmatpush1.msra.mxu0 0.0
        %402 = vmatprep.subr.mxu0 0.0
        %403 = vmatpush1.msra.mxu0 0.0
        %404 = vmatprep.subr.mxu0 0.0
        %405 = vmatpush1.msra.mxu0 0.0
        %406 = vmatprep.subr.mxu0 0.0
        %407 = vmatpush1.msra.mxu0 0.0
        %408 = vmatprep.subr.mxu0 0.0
        %409 = vmatpush1.msra.mxu0 0.0
        %410 = vmatprep.subr.mxu0 0.0
        %411 = vmatpush1.msra.mxu0 0.0
        %412 = vmatprep.subr.mxu0 0.0
        %413 = vmatpush1.msra.mxu0 0.0
        %414 = vmatprep.subr.mxu0 0.0
        %415 = vmatpush1.msra.mxu0 0.0
        %416 = vmatprep.subr.mxu0 0.0
        %417 = vmatpush1.msra.mxu0 0.0
        %418 = vmatprep.mubr.f32.mxu0 0.0
        %419 = vmatmul.mubr.f32.gmra.mrb[0].mxu0 %v343
        %v420 = vpop.f32.mrb[0].mxu0
        %v421 = vadd.f32 0.0, %v420
        %v422 = vpop.f32.mrb[0].mxu0
        %423 = vmatprep.mubr.f32.mxu0 0.0
        %424 = vmatmul.mubr.f32.gmra.mrb[0].mxu0 %v346
        %v425 = vpop.f32.mrb[0].mxu0
        %v426 = vadd.f32 0.0, %v425
        %v427 = vpop.f32.mrb[0].mxu0
        %428 = vmatprep.mubr.f32.mxu0 0.0
        %429 = vmatmul.mubr.f32.gmra.mrb[0].mxu0 %v349
        %v430 = vpop.f32.mrb[0].mxu0
        %v431 = vadd.f32 0.0, %v430
        %v432 = vpop.f32.mrb[0].mxu0
        %433 = vmatprep.mubr.f32.mxu0 0.0
        %434 = vmatmul.mubr.f32.gmra.mrb[0].mxu0 %v352
        %v435 = vpop.f32.mrb[0].mxu0
        %v436 = vadd.f32 0.0, %v435
        %v437 = vpop.f32.mrb[0].mxu0
        %438 = vdwg.mxu0
        %v439 = vld [vmem:[%s318] sm:$0xff]
        %v440 = vld [vmem:[%s318 + $0x8] sm:$0xff]
        %v441 = vld [vmem:[%s318 + $0x10] sm:$0xff]
        %v442 = vld [vmem:[%s318 + $0x18] sm:$0xff]
        %444 = vset.pattern.permute.xlu0 0
        %445 = vperm.xlu0 %444, %v439
        %v446 = vpop.permute.xlu0 %445
        %449 = vset.pattern.permute.xlu0 0
        %450 = vperm.xlu0 %449, %v440
        %v451 = vpop.permute.xlu0 %450
        %454 = vset.pattern.permute.xlu0 0
        %455 = vperm.xlu0 %454, %v441
        %v456 = vpop.permute.xlu0 %455
        %459 = vset.pattern.permute.xlu0 0
        %460 = vperm.xlu0 %459, %v442
        %v461 = vpop.permute.xlu0 %460
        %v463 = vmul.f32 %v421, %v446
        %v464 = vmul.f32 %v426, %v451
        %v465 = vmul.f32 %v431, %v456
        %v466 = vmul.f32 %v436, %v461
        %v467 = vld [vmem:[#allocation5] sm:$0xff]
        %v468 = vld [vmem:[#allocation5 + $0x8] sm:$0xff]
        %v469 = vld [vmem:[#allocation5 + $0x10] sm:$0xff]
        %v470 = vld [vmem:[#allocation5 + $0x18] sm:$0xff]
        %v471 = vld [vmem:[%s260] sm:$0xff]
        %v472 = vld [vmem:[%s260 + $0x8] sm:$0xff]
        %v473 = vld [vmem:[%s260 + $0x10] sm:$0xff]
        %v474 = vld [vmem:[%s260 + $0x18] sm:$0xff]
        %v475 = vld [vmem:[%s260 + $0x20] sm:$0xff]
        %v476 = vld [vmem:[%s260 + $0x28] sm:$0xff]
        %v477 = vld [vmem:[%s260 + $0x30] sm:$0xff]
        %v478 = vld [vmem:[%s260 + $0x38] sm:$0xff]
        %v479 = vld [vmem:[%s260 + $0x40] sm:$0xff]
        %v480 = vld [vmem:[%s260 + $0x48] sm:$0xff]
        %v481 = vld [vmem:[%s260 + $0x50] sm:$0xff]
        %v482 = vld [vmem:[%s260 + $0x58] sm:$0xff]
        %v483 = vld [vmem:[%s260 + $0x60] sm:$0xff]
        %v484 = vld [vmem:[%s260 + $0x68] sm:$0xff]
        %v485 = vld [vmem:[%s260 + $0x70] sm:$0xff]
        %v486 = vld [vmem:[%s260 + $0x78] sm:$0xff]
        %487 = vmatprep.subr.mxu0 0.0
        %488 = vmatpush1.msra.mxu0 %v471
        %489 = vmatprep.subr.mxu0 0.0
        %490 = vmatpush1.msra.mxu0 %v472
        %491 = vmatprep.subr.mxu0 0.0
        %492 = vmatpush1.msra.mxu0 %v473
        %493 = vmatprep.subr.mxu0 0.0
        %494 = vmatpush1.msra.mxu0 %v474
        %495 = vmatprep.subr.mxu0 0.0
        %496 = vmatpush1.msra.mxu0 %v475
        %497 = vmatprep.subr.mxu0 0.0
        %498 = vmatpush1.msra.mxu0 %v476
        %499 = vmatprep.subr.mxu0 0.0
        %500 = vmatpush1.msra.mxu0 %v477
        %501 = vmatprep.subr.mxu0 0.0
        %502 = vmatpush1.msra.mxu0 %v478
        %503 = vmatprep.subr.mxu0 0.0
        %504 = vmatpush1.msra.mxu0 %v479
        %505 = vmatprep.subr.mxu0 0.0
        %506 = vmatpush1.msra.mxu0 %v480
        %507 = vmatprep.subr.mxu0 0.0
        %508 = vmatpush1.msra.mxu0 %v481
        %509 = vmatprep.subr.mxu0 0.0
        %510 = vmatpush1.msra.mxu0 %v482
        %511 = vmatprep.subr.mxu0 0.0
        %512 = vmatpush1.msra.mxu0 %v483
        %513 = vmatprep.subr.mxu0 0.0
        %514 = vmatpush1.msra.mxu0 %v484
        %515 = vmatprep.subr.mxu0 0.0
        %516 = vmatpush1.msra.mxu0 %v485
        %517 = vmatprep.subr.mxu0 0.0
        %518 = vmatpush1.msra.mxu0 %v486
        %519 = vmatprep.subr.mxu0 0.0
        %520 = vmatpush1.msra.mxu0 0.0
        %521 = vmatprep.subr.mxu0 0.0
        %522 = vmatpush1.msra.mxu0 0.0
        %523 = vmatprep.subr.mxu0 0.0
        %524 = vmatpush1.msra.mxu0 0.0
        %525 = vmatprep.subr.mxu0 0.0
        %526 = vmatpush1.msra.mxu0 0.0
        %527 = vmatprep.subr.mxu0 0.0
        %528 = vmatpush1.msra.mxu0 0.0
        %529 = vmatprep.subr.mxu0 0.0
        %530 = vmatpush1.msra.mxu0 0.0
        %531 = vmatprep.subr.mxu0 0.0
        %532 = vmatpush1.msra.mxu0 0.0
        %533 = vmatprep.subr.mxu0 0.0
        %534 = vmatpush1.msra.mxu0 0.0
        %535 = vmatprep.subr.mxu0 0.0
        %536 = vmatpush1.msra.mxu0 0.0
        %537 = vmatprep.subr.mxu0 0.0
        %538 = vmatpush1.msra.mxu0 0.0
        %539 = vmatprep.subr.mxu0 0.0
        %540 = vmatpush1.msra.mxu0 0.0
        %541 = vmatprep.subr.mxu0 0.0
        %542 = vmatpush1.msra.mxu0 0.0
        %543 = vmatprep.subr.mxu0 0.0
        %544 = vmatpush1.msra.mxu0 0.0
        %545 = vmatprep.subr.mxu0 0.0
        %546 = vmatpush1.msra.mxu0 0.0
        %547 = vmatprep.subr.mxu0 0.0
        %548 = vmatpush1.msra.mxu0 0.0
        %549 = vmatprep.subr.mxu0 0.0
        %550 = vmatpush1.msra.mxu0 0.0
        %551 = vmatprep.mubr.f32.mxu0 0.0
        %552 = vmatmul.mubr.f32.gmra.mrb[0].mxu0 %v463
        %v553 = vpop.f32.mrb[0].mxu0
        %v554 = vadd.f32 0.0, %v553
        %v555 = vpop.f32.mrb[0].mxu0
        %556 = vmatprep.mubr.f32.mxu0 0.0
        %557 = vmatmul.mubr.f32.gmra.mrb[0].mxu0 %v464
        %v558 = vpop.f32.mrb[0].mxu0
        %v559 = vadd.f32 0.0, %v558
        %v560 = vpop.f32.mrb[0].mxu0
        %561 = vmatprep.mubr.f32.mxu0 0.0
        %562 = vmatmul.mubr.f32.gmra.mrb[0].mxu0 %v465
        %v563 = vpop.f32.mrb[0].mxu0
        %v564 = vadd.f32 0.0, %v563
        %v565 = vpop.f32.mrb[0].mxu0
        %566 = vmatprep.mubr.f32.mxu0 0.0
        %567 = vmatmul.mubr.f32.gmra.mrb[0].mxu0 %v466
        %v568 = vpop.f32.mrb[0].mxu0
        %v569 = vadd.f32 0.0, %v568
        %v570 = vpop.f32.mrb[0].mxu0
        %571 = vdwg.mxu0
        %v572 = vadd.f32 %v467, %v554
        %v573 = vadd.f32 %v468, %v559
        %v574 = vadd.f32 %v469, %v564
        %v575 = vadd.f32 %v470, %v569
        %576 = vst [vmem:[#allocation5] sm:$0xff] %v572
        %577 = vst [vmem:[#allocation5 + $0x8] sm:$0xff] %v573
        %578 = vst [vmem:[#allocation5 + $0x10] sm:$0xff] %v574
        %579 = vst [vmem:[#allocation5 + $0x18] sm:$0xff] %v575
        %p580 = scmp.eq.s32.totalorder %s25, 2
        // Predicated region
        $region49: #{tpu_custom_call.1} parent=39 // pred_check
          %p581 = pneg %p580
        $region50: #{tpu_custom_call.1} parent=39 // pred_check_branch
          %583 = sbr.rel (%p581) target = $region52
        $region51: #{tpu_custom_call.1} parent=39 // pred_region
          %v584 = vld [vmem:[#allocation5] sm:$0xff]
          %v585 = vld [vmem:[#allocation5 + $0x8] sm:$0xff]
          %v586 = vld [vmem:[#allocation5 + $0x10] sm:$0xff]
          %v587 = vld [vmem:[#allocation5 + $0x18] sm:$0xff]
          %v588 = vld [vmem:[%s4] sm:$0x1]
          %v590 = vlaneseq
          %v591 = vshrl.u32 %v590, 7
          %v592 = vsub.s32 0, %v591
          %v593 = vrot.slane %v588, %v592
          %v595 = vadd.f32 %v584, %v593
          %v596 = vadd.f32 %v585, %v593
          %v597 = vadd.f32 %v586, %v593
          %v598 = vadd.f32 %v587, %v593
          %599 = vst [vmem:[#allocation5] sm:$0xff] %v595
          %600 = vst [vmem:[#allocation5 + $0x8] sm:$0xff] %v596
          %601 = vst [vmem:[#allocation5 + $0x10] sm:$0xff] %v597
          %602 = vst [vmem:[#allocation5 + $0x18] sm:$0xff] %v598
        $region52: #{tpu_custom_call.1} parent=39 // pred_fallthru
          _
        // Predicated region
        $region53: #{tpu_custom_call.1} parent=39 // pred_check
          %p603 = pneg %p174
        $region54: #{tpu_custom_call.1} parent=39 // pred_check_branch
          %605 = sbr.rel (%p603) target = $region56
        $region55: #{tpu_custom_call.1} parent=39 // pred_region
          %s606 = smul.u32 4, %s24
          %s608 = ssub.s32 512, 512
          %609 = vsyncadd [#allocation4], %s608
          %s610 = smul.addr %s606, 128
          %s611 = scalar_lea.hbm %s5, %s610
          %s612 = sshll.u32 [#allocation5], 4
          %s613 = int_to_ptr.vmem [resolvable:$true] %s612
          %618 = dma.vmem_to_hbm [thread:$0]  %s613, 512, %s611, [#allocation4], 128, 128, 8
        $region56: #{tpu_custom_call.1} parent=39 // pred_fallthru
          _
        // Predicated region
        $region57: #{tpu_custom_call.1} parent=39 // pred_check
          %p619 = pneg %p174
        $region58: #{tpu_custom_call.1} parent=39 // pred_check_branch
          %621 = sbr.rel (%p619) target = $region60
        $region59: #{tpu_custom_call.1} parent=39 // pred_region
          %622 = dma.done [#allocation4], 512
        $region60: #{tpu_custom_call.1} parent=39 // pred_fallthru
          _
      $region40: #{tpu_custom_call.1} parent=5 // pred_fallthru
        _
      %p623 = scmp.le.s32.totalorder 2, %s15
      // Predicated region
      $region61: #{tpu_custom_call.1} parent=5 // pred_check
        %p624 = pneg %p623
      $region62: #{tpu_custom_call.1} parent=5 // pred_check_branch
        %626 = sbr.rel (%p624) target = $region64
      $region63: #{tpu_custom_call.1} parent=5 // pred_region
        %s627 = ssub.s32 %s15, 2
      $region64: #{tpu_custom_call.1} parent=5 // pred_fallthru
        _
    $region6: #{tpu_custom_call.1} parent=1 // loop_footer
      %s19 = sadd.s32 1, %s15
    $region7: #{tpu_custom_call.1} parent=1 // loop_footer_branch
      %14 = sbr.rel target = $region3
    $region8: #{tpu_custom_call.1} parent=1 // loop_exit
      _
    %628 = vsyncpa [#allocation3], 1
    %s629 = scalar_lea.sflag [#allocation3], 1
    %630 = vsyncpa %s629, 1
    %631 = vsyncpa [#allocation4], 1
    %s632 = scalar_lea.sflag [#allocation4], 1
    %633 = vsyncpa %s632, 1

</llo_original>
